<compile_context>
chip_gen: v7x
topology: tpu7x:2x2x1
jax: 0.10.0
libtpu: 0.0.40
codegen_flags: <defaults>
</compile_context>

<pallas_src>
import jax
import jax.numpy as jnp
from jax.experimental import pallas as pl
from jax.experimental.pallas import tpu as pltpu

LN_EPS = 1e-5  # PyTorch nn.LayerNorm default

# feature sizes from the PyTorch module
ORI_IN, ORI_H = 14, 28
VEL_IN, VEL_H = 9, 18
HGT_IN, HGT_H = 1, 2
IN_F = ORI_IN + VEL_IN + HGT_IN        # 24
OUT_F = ORI_H + VEL_H + HGT_H          # 48

# Packed parameter layout (rows of a single [PARAM_ROWS, 48] f32 array).
_W1_R0, _W1_R1 = 0, IN_F                       # [0, 24)   block-diagonal W1
_W2_R0, _W2_R1 = _W1_R1, _W1_R1 + OUT_F        # [24, 72)  block-diagonal W2
_M_R0, _M_R1 = _W2_R1, _W2_R1 + OUT_F          # [72, 120) LN segment-mean matrix
_VEC_R0 = _M_R1                                # [120,128) b1, b2, gamma, beta, pad
PARAM_ROWS = 128

# f32, 128-lane padded in VMEM: ~20 MiB live at this tile -> fits v5e/v6e/v7x.
_MAX_TB = 4096
_VMEM_LIMIT = 48 * 1024 * 1024


def _pick_tb(batch):
    # B <= _MAX_TB: a single block whose dims equal the full array dims
    # (always legal, no padding/masking).  Larger batches: 8/128-aligned tile;
    # Pallas masks the ragged last block on writeback.
    return batch if batch <= _MAX_TB else _MAX_TB


def walker_encoder_kernel(x_ref, p_ref, out_ref):
    x = x_ref[...]                                   # [TB, 24]
    w1 = p_ref[_W1_R0:_W1_R1, :]                     # [24, 48]
    w2 = p_ref[_W2_R0:_W2_R1, :]                     # [48, 48]
    m = p_ref[_M_R0:_M_R1, :]                        # [48, 48]
    vecs = p_ref[_VEC_R0:PARAM_ROWS, :]              # [8, 48] aligned tile load
    b1 = vecs[0:1, :]
    b2 = vecs[1:2, :]
    gamma = vecs[2:3, :]
    beta = vecs[3:4, :]

    # Fused block-diagonal MLP == the three per-branch MLPs (ReLU, biases and
    # per-segment LN all respect the block structure).
    h = jnp.dot(x, w1, preferred_element_type=jnp.float32) + b1
    h = jnp.maximum(h, 0.0)
    h = jnp.dot(h, w2, preferred_element_type=jnp.float32) + b2

    # Per-segment LayerNorm, fully lane-dense: M broadcasts each segment's
    # mean / variance to every lane of that segment via the MXU, so there are
    # no slices, no concats and no cross-lane (XLU) reductions.
    mu = jnp.dot(h, m, preferred_element_type=jnp.float32)
    d = h - mu
    var = jnp.dot(d * d, m, preferred_element_type=jnp.float32)  # biased, like nn.LayerNorm

    out_ref[...] = d * jax.lax.rsqrt(var + LN_EPS) * gamma + beta


@jax.jit
def walker_encoder_forward(x, params):
    """x: dict with 'orientations' [B,14], 'velocity' [B,9], 'height' [B] or [B,1].
    params: output of pack_params()."""
    ori = x["orientations"].astype(jnp.float32)
    vel = x["velocity"].astype(jnp.float32)
    hgt = x["height"].astype(jnp.float32)
    if hgt.ndim == 1:
        hgt = hgt[:, None]
    # One packed [B, 24] input -> one DMA stream per grid step, no in-kernel
    # lane-offset concatenation.
    xp = jnp.concatenate([ori, vel, hgt], axis=-1)

    B = xp.shape[0]
    tb = _pick_tb(B)
    grid = (pl.cdiv(B, tb),)

    return pl.pallas_call(
        walker_encoder_kernel,
        out_shape=jax.ShapeDtypeStruct((B, OUT_F), jnp.float32),
        grid=grid,
        in_specs=[
            pl.BlockSpec((tb, IN_F), lambda i: (i, 0)),
            pl.BlockSpec((PARAM_ROWS, OUT_F), lambda i: (0, 0)),  # resident params
        ],
        out_specs=pl.BlockSpec((tb, OUT_F), lambda i: (i, 0)),
        compiler_params=pltpu.CompilerParams(
            dimension_semantics=("parallel",),
            vmem_limit_bytes=_VMEM_LIMIT,
        ),
    )(xp, params)


def pack_params(p):
    """Pack the 20 per-branch parameters (+ the LN segment matrix) into one array."""
    w1 = jnp.zeros((IN_F, OUT_F), jnp.float32)
    w1 = w1.at[0:ORI_IN, 0:ORI_H].set(p["w1o"])
    w1 = w1.at[ORI_IN:ORI_IN + VEL_IN, ORI_H:ORI_H + VEL_H].set(p["w1v"])
    w1 = w1.at[ORI_IN + VEL_IN:IN_F, ORI_H + VEL_H:OUT_F].set(p["w1h"])

    w2 = jnp.zeros((OUT_F, OUT_F), jnp.float32)
    w2 = w2.at[0:ORI_H, 0:ORI_H].set(p["w2o"])
    w2 = w2.at[ORI_H:ORI_H + VEL_H, ORI_H:ORI_H + VEL_H].set(p["w2v"])
    w2 = w2.at[ORI_H + VEL_H:OUT_F, ORI_H + VEL_H:OUT_F].set(p["w2h"])

    # LN segment-mean matrix: M[i, j] = 1/|seg| if i and j share a segment.
    m = jnp.zeros((OUT_F, OUT_F), jnp.float32)
    off = 0
    for seg in (ORI_H, VEL_H, HGT_H):
        m = m.at[off:off + seg, off:off + seg].set(1.0 / seg)
        off += seg

    def cat(a, b, c):
        return jnp.concatenate([a.reshape(-1), b.reshape(-1), c.reshape(-1)])

    params = jnp.zeros((PARAM_ROWS, OUT_F), jnp.float32)
    params = params.at[_W1_R0:_W1_R1, :].set(w1)
    params = params.at[_W2_R0:_W2_R1, :].set(w2)
    params = params.at[_M_R0:_M_R1, :].set(m)
    params = params.at[_VEC_R0 + 0].set(cat(p["b1o"], p["b1v"], p["b1h"]))
    params = params.at[_VEC_R0 + 1].set(cat(p["b2o"], p["b2v"], p["b2h"]))
    params = params.at[_VEC_R0 + 2].set(cat(p["go"], p["gv"], p["gh"]))
    params = params.at[_VEC_R0 + 3].set(cat(p["bo"], p["bv"], p["bh"]))
    return params


def init_params(key):
    """Deterministic synthetic parameters (same shapes as the PyTorch module)."""
    ks = jax.random.split(key, 12)

    def lin(kw, kb, fan_in, fan_out):
        bound = 1.0 / jnp.sqrt(jnp.float32(fan_in))
        w = jax.random.uniform(kw, (fan_in, fan_out), jnp.float32, -bound, bound)
        b = jax.random.uniform(kb, (1, fan_out), jnp.float32, -bound, bound)
        return w, b

    w1o, b1o = lin(ks[0], ks[1], ORI_IN, ORI_H)
    w2o, b2o = lin(ks[2], ks[3], ORI_H, ORI_H)
    w1v, b1v = lin(ks[4], ks[5], VEL_IN, VEL_H)
    w2v, b2v = lin(ks[6], ks[7], VEL_H, VEL_H)
    w1h, b1h = lin(ks[8], ks[9], HGT_IN, HGT_H)
    w2h, b2h = lin(ks[10], ks[11], HGT_H, HGT_H)

    return dict(
        w1o=w1o, b1o=b1o, w2o=w2o, b2o=b2o,
        go=jnp.ones((1, ORI_H), jnp.float32), bo=jnp.zeros((1, ORI_H), jnp.float32),
        w1v=w1v, b1v=b1v, w2v=w2v, b2v=b2v,
        gv=jnp.ones((1, VEL_H), jnp.float32), bv=jnp.zeros((1, VEL_H), jnp.float32),
        w1h=w1h, b1h=b1h, w2h=w2h, b2h=b2h,
        gh=jnp.ones((1, HGT_H), jnp.float32), bh=jnp.zeros((1, HGT_H), jnp.float32),
    )


def _reference(x, p):
    """Pure-JAX reference matching the PyTorch forward."""
    def mlp(v, w1, b1, w2, b2, g, b):
        h = jnp.maximum(v @ w1 + b1, 0.0) @ w2 + b2
        mu = h.mean(-1, keepdims=True)
        var = ((h - mu) ** 2).mean(-1, keepdims=True)
        return (h - mu) / jnp.sqrt(var + LN_EPS) * g + b

    hgt = x["height"]
    if hgt.ndim == 1:
        hgt = hgt[:, None]
    return jnp.concatenate([
        mlp(x["orientations"], p["w1o"], p["b1o"], p["w2o"], p["b2o"], p["go"], p["bo"]),
        mlp(x["velocity"], p["w1v"], p["b1v"], p["w2v"], p["b2v"], p["gv"], p["bv"]),
        mlp(hgt, p["w1h"], p["b1h"], p["w2h"], p["b2h"], p["gh"], p["bh"]),
    ], axis=-1)


if __name__ == "__main__":
    key = jax.random.PRNGKey(0)
    k_p, k_o, k_v, k_h = jax.random.split(key, 4)

    raw = init_params(k_p)
    packed = pack_params(raw)

    # Tolerance note: the 2-element height LayerNorm amplifies tiny matmul
    # rounding differences by up to ~1/sqrt(eps) when its variance is ~0,
    # so a slightly looser tolerance than pure elementwise f32 is used.
    ATOL = 2e-4
    RTOL = 2e-4

    # Small required test (batch=2, 1-D height like the env observation).
    B = 2
    x = {
        "orientations": jax.random.normal(k_o, (B, ORI_IN), jnp.float32),
        "velocity": jax.random.normal(k_v, (B, VEL_IN), jnp.float32),
        "height": jax.random.normal(k_h, (B,), jnp.float32),
    }
    out = jax.block_until_ready(walker_encoder_forward(x, packed))
    ref = _reference(x, raw)
    assert out.shape == (B, OUT_F), out.shape
    assert jnp.allclose(out, ref, atol=ATOL, rtol=RTOL), \
        float(jnp.max(jnp.abs(out - ref)))

    # Larger, non-tile-multiple batch: exercises the single big (non-8-multiple)
    # block path and 2-D height input.
    B2 = 300
    k_o2, k_v2, k_h2 = jax.random.split(jax.random.PRNGKey(1), 3)
    x2 = {
        "orientations": jax.random.normal(k_o2, (B2, ORI_IN), jnp.float32),
        "velocity": jax.random.normal(k_v2, (B2, VEL_IN), jnp.float32),
        "height": jax.random.normal(k_h2, (B2, 1), jnp.float32),
    }
    out2 = jax.block_until_ready(walker_encoder_forward(x2, packed))
    ref2 = _reference(x2, raw)
    assert out2.shape == (B2, OUT_F), out2.shape
    assert jnp.allclose(out2, ref2, atol=ATOL, rtol=RTOL), \
        float(jnp.max(jnp.abs(out2 - ref2)))

    print("KERNEL_OK")
</pallas_src>

<mosaic_0001>
module attributes {stable_mosaic.version = 11 : i64} {
  func.func @walker_encoder_kernel(%arg0: i32, %arg1: memref<2x24xf32, #tpu.memory_space<vmem>>, %arg2: memref<128x48xf32, #tpu.memory_space<vmem>>, %arg3: memref<2x48xf32, #tpu.memory_space<vmem>>) attributes {dimension_semantics = [#tpu.dimension_semantics<parallel>], iteration_bounds = array<i64: 1>, scalar_prefetch = 0 : i64, scratch_operands = 0 : i64, tpu.core_type = #tpu.core_type<tc>, window_params = [{transform_indices = @transform_0, window_bounds = array<i64: 2, 24>}, {pipeline_mode = #tpu.pipeline_mode<synchronous>, transform_indices = @transform_1, window_bounds = array<i64: 128, 48>}, {transform_indices = @transform_2, window_bounds = array<i64: 2, 48>}]} {
    %c0 = arith.constant 0 : index
    %c0_0 = arith.constant 0 : index
    %0 = vector.load %arg1[%c0, %c0_0] : memref<2x24xf32, #tpu.memory_space<vmem>>, vector<2x24xf32>
    %c0_1 = arith.constant 0 : index
    %c0_2 = arith.constant 0 : index
    %1 = vector.load %arg2[%c0_1, %c0_2] : memref<128x48xf32, #tpu.memory_space<vmem>>, vector<24x48xf32>
    %c24 = arith.constant 24 : index
    %c0_3 = arith.constant 0 : index
    %2 = vector.load %arg2[%c24, %c0_3] : memref<128x48xf32, #tpu.memory_space<vmem>>, vector<48x48xf32>
    %c72 = arith.constant 72 : index
    %c0_4 = arith.constant 0 : index
    %3 = vector.load %arg2[%c72, %c0_4] : memref<128x48xf32, #tpu.memory_space<vmem>>, vector<48x48xf32>
    %c120 = arith.constant 120 : index
    %c0_5 = arith.constant 0 : index
    %4 = vector.load %arg2[%c120, %c0_5] : memref<128x48xf32, #tpu.memory_space<vmem>>, vector<8x48xf32>
    %5 = vector.extract_strided_slice %4 {offsets = [0, 0], sizes = [1, 48], strides = [1, 1]} : vector<8x48xf32> to vector<1x48xf32>
    %6 = vector.extract_strided_slice %4 {offsets = [1, 0], sizes = [1, 48], strides = [1, 1]} : vector<8x48xf32> to vector<1x48xf32>
    %7 = vector.extract_strided_slice %4 {offsets = [2, 0], sizes = [1, 48], strides = [1, 1]} : vector<8x48xf32> to vector<1x48xf32>
    %8 = vector.extract_strided_slice %4 {offsets = [3, 0], sizes = [1, 48], strides = [1, 1]} : vector<8x48xf32> to vector<1x48xf32>
    %cst = arith.constant dense<0.000000e+00> : vector<2x48xf32>
    %9 = tpu.matmul %0, %1, %cst {dimension_numbers = #tpu.dot_dimension_numbers<[1], [0], [0], [1], [0, 0, 1, 1], [], []>} : vector<2x24xf32>, vector<24x48xf32>, vector<2x48xf32> -> vector<2x48xf32>
    %10 = vector.broadcast %5 : vector<1x48xf32> to vector<2x48xf32>
    %11 = arith.addf %9, %10 : vector<2x48xf32>
    %cst_6 = arith.constant 0.000000e+00 : f32
    %12 = vector.broadcast %cst_6 : f32 to vector<2x48xf32>
    %13 = arith.maximumf %11, %12 : vector<2x48xf32>
    %cst_7 = arith.constant dense<0.000000e+00> : vector<2x48xf32>
    %14 = tpu.matmul %13, %2, %cst_7 {dimension_numbers = #tpu.dot_dimension_numbers<[1], [0], [0], [1], [0, 0, 1, 1], [], []>} : vector<2x48xf32>, vector<48x48xf32>, vector<2x48xf32> -> vector<2x48xf32>
    %15 = vector.broadcast %6 : vector<1x48xf32> to vector<2x48xf32>
    %16 = arith.addf %14, %15 : vector<2x48xf32>
    %cst_8 = arith.constant dense<0.000000e+00> : vector<2x48xf32>
    %17 = tpu.matmul %16, %3, %cst_8 {dimension_numbers = #tpu.dot_dimension_numbers<[1], [0], [0], [1], [0, 0, 1, 1], [], []>} : vector<2x48xf32>, vector<48x48xf32>, vector<2x48xf32> -> vector<2x48xf32>
    %18 = arith.subf %16, %17 : vector<2x48xf32>
    %19 = arith.mulf %18, %18 : vector<2x48xf32>
    %cst_9 = arith.constant dense<0.000000e+00> : vector<2x48xf32>
    %20 = tpu.matmul %19, %3, %cst_9 {dimension_numbers = #tpu.dot_dimension_numbers<[1], [0], [0], [1], [0, 0, 1, 1], [], []>} : vector<2x48xf32>, vector<48x48xf32>, vector<2x48xf32> -> vector<2x48xf32>
    %cst_10 = arith.constant 9.99999974E-6 : f32
    %21 = vector.broadcast %cst_10 : f32 to vector<2x48xf32>
    %22 = arith.addf %20, %21 : vector<2x48xf32>
    %23 = math.rsqrt %22 : vector<2x48xf32>
    %24 = arith.mulf %18, %23 : vector<2x48xf32>
    %25 = vector.broadcast %7 : vector<1x48xf32> to vector<2x48xf32>
    %26 = arith.mulf %24, %25 : vector<2x48xf32>
    %27 = vector.broadcast %8 : vector<1x48xf32> to vector<2x48xf32>
    %28 = arith.addf %26, %27 : vector<2x48xf32>
    %c0_11 = arith.constant 0 : index
    %c0_12 = arith.constant 0 : index
    %29 = vector.load %arg3[%c0_11, %c0_12] : memref<2x48xf32, #tpu.memory_space<vmem>>, vector<2x48xf32>
    tpu.vector_store %arg3[%c0_11, %c0_12], %28 {strides = array<i32>} : memref<2x48xf32, #tpu.memory_space<vmem>>, vector<2x48xf32>,
    return
  }
  func.func @transform_0(%arg0: i32) -> (i32, i32) {
    %c0_i32 = arith.constant 0 : i32
    %c0_i32_0 = arith.constant 0 : i32
    return %arg0, %c0_i32 : i32, i32
  }
  func.func @transform_1(%arg0: i32) -> (i32, i32) {
    %c0_i32 = arith.constant 0 : i32
    %c0_i32_0 = arith.constant 0 : i32
    %c0_i32_1 = arith.constant 0 : i32
    return %c0_i32, %c0_i32_0 : i32, i32
  }
  func.func @transform_2(%arg0: i32) -> (i32, i32) {
    %c0_i32 = arith.constant 0 : i32
    %c0_i32_0 = arith.constant 0 : i32
    return %arg0, %c0_i32 : i32, i32
  }
}

</mosaic_0001>

<llo_original>
// kernel: walker_encoder_forward.1
$region0: #{walker_encoder_forward.1}
  #allocation0 [shape = 'u32[]', space=smem, size = 0x4, offset = 0x4, fixed_abs, tag = 'smem constant byte address 0x4 - core index']
  #allocation1 [shape = 'u32[144,128]{1,0:T(1,128)}', space=vmem, size = 0x12000, scoped, tag = 'internal scratch']
  %s0 = inlined_call_operand.vmem [shape: f32[2,24], index: 0, kind: input, shape index: {}]
  %s1 = inlined_call_operand.vmem [shape: f32[128,48], index: 1, kind: input, shape index: {}]
  %s2 = inlined_call_operand.hbm [shape: f32[2,48], index: 2, kind: output, shape index: {}]
  %s3 = sld [smem:[#allocation0]]
  $region18: #{walker_encoder_forward.1} parent=0
    _
  %s5 = ssub.s32 1, %s3
  %s6 = scalar_select 0, %s5, %s3
  $region1: #{walker_encoder_forward.1} parent=0
    #allocation2 [shape = 'u8[1024]{0}', space=vmem, size = 0x400, scoped, tag = 'output window, operand 0, single buffered']
    #allocation3 [shape = 's32[1]{0}', space=sflag, size = 0x4, scoped, tag = 'scoped memory for walker_encoder_forward.1']
    %7 = vsyncpa [#allocation3], 0
    // Predicated region
    $region2: #{walker_encoder_forward.1} parent=1 // pred_check
      _
    $region3: #{walker_encoder_forward.1} parent=1 // pred_check_branch
      %9 = sbr.rel (0) target = $region5
    $region4: #{walker_encoder_forward.1} parent=1 // pred_region
      _
    $region5: #{walker_encoder_forward.1} parent=1 // pred_fallthru
      _
    // Predicated region
    $region6: #{walker_encoder_forward.1} parent=1 // pred_check
      _
    $region7: #{walker_encoder_forward.1} parent=1 // pred_check_branch
      %11 = sbr.rel (0) target = $region9
    $region8: #{walker_encoder_forward.1} parent=1 // pred_region
      _
    $region9: #{walker_encoder_forward.1} parent=1 // pred_fallthru
      _
    %v12 = vld [vmem:[%s0] sm:$0x3]
    %v13 = vld [vmem:[%s1] sm:$0xff]
    %v14 = vld [vmem:[%s1 + $0x8] sm:$0xff]
    %v15 = vld [vmem:[%s1 + $0x10] sm:$0xff]
    %v16 = vld [vmem:[%s1 + $0x18] sm:$0xff]
    %v17 = vld [vmem:[%s1 + $0x20] sm:$0xff]
    %v18 = vld [vmem:[%s1 + $0x28] sm:$0xff]
    %v19 = vld [vmem:[%s1 + $0x30] sm:$0xff]
    %v20 = vld [vmem:[%s1 + $0x38] sm:$0xff]
    %v21 = vld [vmem:[%s1 + $0x40] sm:$0xff]
    %v22 = vld [vmem:[%s1 + $0x48] sm:$0xff]
    %v23 = vld [vmem:[%s1 + $0x50] sm:$0xff]
    %v24 = vld [vmem:[%s1 + $0x58] sm:$0xff]
    %v25 = vld [vmem:[%s1 + $0x60] sm:$0xff]
    %v26 = vld [vmem:[%s1 + $0x68] sm:$0xff]
    %v27 = vld [vmem:[%s1 + $0x70] sm:$0xff]
    %v28 = vld [vmem:[%s1 + $0x78] sm:$0xff]
    %v29 = vlaneseq
    %v30 = vshrl.u32 %v29, 7
    %v31 = vsub.s32 0, %v30
    %v32 = vrot.slane %v28, %v31
    %vm33 = vcmask 195584
    %v35 = vsel %vm33, %v12, 0
    %37 = vmatprep.subr.mxu0 0.0
    %38 = vmatpush1.msra.mxu0 %v13
    %39 = vmatprep.subr.mxu0 0.0
    %40 = vmatpush1.msra.mxu0 %v14
    %41 = vmatprep.subr.mxu0 0.0
    %42 = vmatpush1.msra.mxu0 %v15
    %43 = vmatprep.subr.mxu0 0.0
    %44 = vmatpush1.msra.mxu0 0.0
    %45 = vmatprep.subr.mxu0 0.0
    %46 = vmatpush1.msra.mxu0 0.0
    %47 = vmatprep.subr.mxu0 0.0
    %48 = vmatpush1.msra.mxu0 0.0
    %49 = vmatprep.subr.mxu0 0.0
    %50 = vmatpush1.msra.mxu0 0.0
    %51 = vmatprep.subr.mxu0 0.0
    %52 = vmatpush1.msra.mxu0 0.0
    %53 = vmatprep.subr.mxu0 0.0
    %54 = vmatpush1.msra.mxu0 0.0
    %55 = vmatprep.subr.mxu0 0.0
    %56 = vmatpush1.msra.mxu0 0.0
    %57 = vmatprep.subr.mxu0 0.0
    %58 = vmatpush1.msra.mxu0 0.0
    %59 = vmatprep.subr.mxu0 0.0
    %60 = vmatpush1.msra.mxu0 0.0
    %61 = vmatprep.subr.mxu0 0.0
    %62 = vmatpush1.msra.mxu0 0.0
    %63 = vmatprep.subr.mxu0 0.0
    %64 = vmatpush1.msra.mxu0 0.0
    %65 = vmatprep.subr.mxu0 0.0
    %66 = vmatpush1.msra.mxu0 0.0
    %67 = vmatprep.subr.mxu0 0.0
    %68 = vmatpush1.msra.mxu0 0.0
    %69 = vmatprep.subr.mxu0 0.0
    %70 = vmatpush1.msra.mxu0 0.0
    %71 = vmatprep.subr.mxu0 0.0
    %72 = vmatpush1.msra.mxu0 0.0
    %73 = vmatprep.subr.mxu0 0.0
    %74 = vmatpush1.msra.mxu0 0.0
    %75 = vmatprep.subr.mxu0 0.0
    %76 = vmatpush1.msra.mxu0 0.0
    %77 = vmatprep.subr.mxu0 0.0
    %78 = vmatpush1.msra.mxu0 0.0
    %79 = vmatprep.subr.mxu0 0.0
    %80 = vmatpush1.msra.mxu0 0.0
    %81 = vmatprep.subr.mxu0 0.0
    %82 = vmatpush1.msra.mxu0 0.0
    %83 = vmatprep.subr.mxu0 0.0
    %84 = vmatpush1.msra.mxu0 0.0
    %85 = vmatprep.subr.mxu0 0.0
    %86 = vmatpush1.msra.mxu0 0.0
    %87 = vmatprep.subr.mxu0 0.0
    %88 = vmatpush1.msra.mxu0 0.0
    %89 = vmatprep.subr.mxu0 0.0
    %90 = vmatpush1.msra.mxu0 0.0
    %91 = vmatprep.subr.mxu0 0.0
    %92 = vmatpush1.msra.mxu0 0.0
    %93 = vmatprep.subr.mxu0 0.0
    %94 = vmatpush1.msra.mxu0 0.0
    %95 = vmatprep.subr.mxu0 0.0
    %96 = vmatpush1.msra.mxu0 0.0
    %97 = vmatprep.subr.mxu0 0.0
    %98 = vmatpush1.msra.mxu0 0.0
    %99 = vmatprep.subr.mxu0 0.0
    %100 = vmatpush1.msra.mxu0 0.0
    %101 = vmatprep.mubr.f32.mxu0 0.0
    %102 = vmatmul.mubr.f32.gmra.mrb[0].mxu0 %v35
    %v103 = vpop.f32.mrb[0].mxu0
    %v104 = vadd.f32 %v32, %v103
    %v105 = vpop.f32.mrb[0].mxu0
    %106 = vdwg.mxu0
    %v107 = vmax.f32 %v104, 0.0
    %v108 = vlaneseq
    %v109 = vshrl.u32 %v108, 7
    %v110 = vsub.s32 1, %v109
    %v111 = vrot.slane %v28, %v110
    %vm112 = vcmask 392192
    %v114 = vsel %vm112, %v107, 0
    %116 = vmatprep.subr.mxu0 0.0
    %117 = vmatpush1.msra.mxu0 %v16
    %118 = vmatprep.subr.mxu0 0.0
    %119 = vmatpush1.msra.mxu0 %v17
    %120 = vmatprep.subr.mxu0 0.0
    %121 = vmatpush1.msra.mxu0 %v18
    %122 = vmatprep.subr.mxu0 0.0
    %123 = vmatpush1.msra.mxu0 %v19
    %124 = vmatprep.subr.mxu0 0.0
    %125 = vmatpush1.msra.mxu0 %v20
    %126 = vmatprep.subr.mxu0 0.0
    %127 = vmatpush1.msra.mxu0 %v21
    %128 = vmatprep.subr.mxu0 0.0
    %129 = vmatpush1.msra.mxu0 0.0
    %130 = vmatprep.subr.mxu0 0.0
    %131 = vmatpush1.msra.mxu0 0.0
    %132 = vmatprep.subr.mxu0 0.0
    %133 = vmatpush1.msra.mxu0 0.0
    %134 = vmatprep.subr.mxu0 0.0
    %135 = vmatpush1.msra.mxu0 0.0
    %136 = vmatprep.subr.mxu0 0.0
    %137 = vmatpush1.msra.mxu0 0.0
    %138 = vmatprep.subr.mxu0 0.0
    %139 = vmatpush1.msra.mxu0 0.0
    %140 = vmatprep.subr.mxu0 0.0
    %141 = vmatpush1.msra.mxu0 0.0
    %142 = vmatprep.subr.mxu0 0.0
    %143 = vmatpush1.msra.mxu0 0.0
    %144 = vmatprep.subr.mxu0 0.0
    %145 = vmatpush1.msra.mxu0 0.0
    %146 = vmatprep.subr.mxu0 0.0
    %147 = vmatpush1.msra.mxu0 0.0
    %148 = vmatprep.subr.mxu0 0.0
    %149 = vmatpush1.msra.mxu0 0.0
    %150 = vmatprep.subr.mxu0 0.0
    %151 = vmatpush1.msra.mxu0 0.0
    %152 = vmatprep.subr.mxu0 0.0
    %153 = vmatpush1.msra.mxu0 0.0
    %154 = vmatprep.subr.mxu0 0.0
    %155 = vmatpush1.msra.mxu0 0.0
    %156 = vmatprep.subr.mxu0 0.0
    %157 = vmatpush1.msra.mxu0 0.0
    %158 = vmatprep.subr.mxu0 0.0
    %159 = vmatpush1.msra.mxu0 0.0
    %160 = vmatprep.subr.mxu0 0.0
    %161 = vmatpush1.msra.mxu0 0.0
    %162 = vmatprep.subr.mxu0 0.0
    %163 = vmatpush1.msra.mxu0 0.0
    %164 = vmatprep.subr.mxu0 0.0
    %165 = vmatpush1.msra.mxu0 0.0
    %166 = vmatprep.subr.mxu0 0.0
    %167 = vmatpush1.msra.mxu0 0.0
    %168 = vmatprep.subr.mxu0 0.0
    %169 = vmatpush1.msra.mxu0 0.0
    %170 = vmatprep.subr.mxu0 0.0
    %171 = vmatpush1.msra.mxu0 0.0
    %172 = vmatprep.subr.mxu0 0.0
    %173 = vmatpush1.msra.mxu0 0.0
    %174 = vmatprep.subr.mxu0 0.0
    %175 = vmatpush1.msra.mxu0 0.0
    %176 = vmatprep.subr.mxu0 0.0
    %177 = vmatpush1.msra.mxu0 0.0
    %178 = vmatprep.subr.mxu0 0.0
    %179 = vmatpush1.msra.mxu0 0.0
    %180 = vmatprep.mubr.f32.mxu0 0.0
    %181 = vmatmul.mubr.f32.gmra.mrb[0].mxu0 %v114
    %v182 = vpop.f32.mrb[0].mxu0
    %v183 = vadd.f32 %v111, %v182
    %v184 = vpop.f32.mrb[0].mxu0
    %185 = vdwg.mxu0
    %v187 = vsel %vm112, %v183, 0
    %189 = vmatprep.subr.mxu0 0.0
    %190 = vmatpush1.msra.mxu0 %v22
    %191 = vmatprep.subr.mxu0 0.0
    %192 = vmatpush1.msra.mxu0 %v23
    %193 = vmatprep.subr.mxu0 0.0
    %194 = vmatpush1.msra.mxu0 %v24
    %195 = vmatprep.subr.mxu0 0.0
    %196 = vmatpush1.msra.mxu0 %v25
    %197 = vmatprep.subr.mxu0 0.0
    %198 = vmatpush1.msra.mxu0 %v26
    %199 = vmatprep.subr.mxu0 0.0
    %200 = vmatpush1.msra.mxu0 %v27
    %201 = vmatprep.subr.mxu0 0.0
    %202 = vmatpush1.msra.mxu0 0.0
    %203 = vmatprep.subr.mxu0 0.0
    %204 = vmatpush1.msra.mxu0 0.0
    %205 = vmatprep.subr.mxu0 0.0
    %206 = vmatpush1.msra.mxu0 0.0
    %207 = vmatprep.subr.mxu0 0.0
    %208 = vmatpush1.msra.mxu0 0.0
    %209 = vmatprep.subr.mxu0 0.0
    %210 = vmatpush1.msra.mxu0 0.0
    %211 = vmatprep.subr.mxu0 0.0
    %212 = vmatpush1.msra.mxu0 0.0
    %213 = vmatprep.subr.mxu0 0.0
    %214 = vmatpush1.msra.mxu0 0.0
    %215 = vmatprep.subr.mxu0 0.0
    %216 = vmatpush1.msra.mxu0 0.0
    %217 = vmatprep.subr.mxu0 0.0
    %218 = vmatpush1.msra.mxu0 0.0
    %219 = vmatprep.subr.mxu0 0.0
    %220 = vmatpush1.msra.mxu0 0.0
    %221 = vmatprep.subr.mxu0 0.0
    %222 = vmatpush1.msra.mxu0 0.0
    %223 = vmatprep.subr.mxu0 0.0
    %224 = vmatpush1.msra.mxu0 0.0
    %225 = vmatprep.subr.mxu0 0.0
    %226 = vmatpush1.msra.mxu0 0.0
    %227 = vmatprep.subr.mxu0 0.0
    %228 = vmatpush1.msra.mxu0 0.0
    %229 = vmatprep.subr.mxu0 0.0
    %230 = vmatpush1.msra.mxu0 0.0
    %231 = vmatprep.subr.mxu0 0.0
    %232 = vmatpush1.msra.mxu0 0.0
    %233 = vmatprep.subr.mxu0 0.0
    %234 = vmatpush1.msra.mxu0 0.0
    %235 = vmatprep.subr.mxu0 0.0
    %236 = vmatpush1.msra.mxu0 0.0
    %237 = vmatprep.subr.mxu0 0.0
    %238 = vmatpush1.msra.mxu0 0.0
    %239 = vmatprep.subr.mxu0 0.0
    %240 = vmatpush1.msra.mxu0 0.0
    %241 = vmatprep.subr.mxu0 0.0
    %242 = vmatpush1.msra.mxu0 0.0
    %243 = vmatprep.subr.mxu0 0.0
    %244 = vmatpush1.msra.mxu0 0.0
    %245 = vmatprep.subr.mxu0 0.0
    %246 = vmatpush1.msra.mxu0 0.0
    %247 = vmatprep.subr.mxu0 0.0
    %248 = vmatpush1.msra.mxu0 0.0
    %249 = vmatprep.subr.mxu0 0.0
    %250 = vmatpush1.msra.mxu0 0.0
    %251 = vmatprep.subr.mxu0 0.0
    %252 = vmatpush1.msra.mxu0 0.0
    %253 = vmatprep.mubr.f32.mxu0 0.0
    %254 = vmatmul.mubr.f32.gmra.mrb[0].mxu0 %v187
    %v255 = vpop.f32.mrb[0].mxu0
    %v256 = vadd.f32 0.0, %v255
    %v257 = vpop.f32.mrb[0].mxu0
    %258 = vdwg.mxu0
    %v259 = vsub.f32 %v183, %v256
    %v260 = vmul.f32 %v259, %v259
    %v262 = vsel %vm112, %v260, 0
    %264 = vmatprep.subr.mxu0 0.0
    %265 = vmatpush1.msra.mxu0 %v22
    %266 = vmatprep.subr.mxu0 0.0
    %267 = vmatpush1.msra.mxu0 %v23
    %268 = vmatprep.subr.mxu0 0.0
    %269 = vmatpush1.msra.mxu0 %v24
    %270 = vmatprep.subr.mxu0 0.0
    %271 = vmatpush1.msra.mxu0 %v25
    %272 = vmatprep.subr.mxu0 0.0
    %273 = vmatpush1.msra.mxu0 %v26
    %274 = vmatprep.subr.mxu0 0.0
    %275 = vmatpush1.msra.mxu0 %v27
    %276 = vmatprep.subr.mxu0 0.0
    %277 = vmatpush1.msra.mxu0 0.0
    %278 = vmatprep.subr.mxu0 0.0
    %279 = vmatpush1.msra.mxu0 0.0
    %280 = vmatprep.subr.mxu0 0.0
    %281 = vmatpush1.msra.mxu0 0.0
    %282 = vmatprep.subr.mxu0 0.0
    %283 = vmatpush1.msra.mxu0 0.0
    %284 = vmatprep.subr.mxu0 0.0
    %285 = vmatpush1.msra.mxu0 0.0
    %286 = vmatprep.subr.mxu0 0.0
    %287 = vmatpush1.msra.mxu0 0.0
    %288 = vmatprep.subr.mxu0 0.0
    %289 = vmatpush1.msra.mxu0 0.0
    %290 = vmatprep.subr.mxu0 0.0
    %291 = vmatpush1.msra.mxu0 0.0
    %292 = vmatprep.subr.mxu0 0.0
    %293 = vmatpush1.msra.mxu0 0.0
    %294 = vmatprep.subr.mxu0 0.0
    %295 = vmatpush1.msra.mxu0 0.0
    %296 = vmatprep.subr.mxu0 0.0
    %297 = vmatpush1.msra.mxu0 0.0
    %298 = vmatprep.subr.mxu0 0.0
    %299 = vmatpush1.msra.mxu0 0.0
    %300 = vmatprep.subr.mxu0 0.0
    %301 = vmatpush1.msra.mxu0 0.0
    %302 = vmatprep.subr.mxu0 0.0
    %303 = vmatpush1.msra.mxu0 0.0
    %304 = vmatprep.subr.mxu0 0.0
    %305 = vmatpush1.msra.mxu0 0.0
    %306 = vmatprep.subr.mxu0 0.0
    %307 = vmatpush1.msra.mxu0 0.0
    %308 = vmatprep.subr.mxu0 0.0
    %309 = vmatpush1.msra.mxu0 0.0
    %310 = vmatprep.subr.mxu0 0.0
    %311 = vmatpush1.msra.mxu0 0.0
    %312 = vmatprep.subr.mxu0 0.0
    %313 = vmatpush1.msra.mxu0 0.0
    %314 = vmatprep.subr.mxu0 0.0
    %315 = vmatpush1.msra.mxu0 0.0
    %316 = vmatprep.subr.mxu0 0.0
    %317 = vmatpush1.msra.mxu0 0.0
    %318 = vmatprep.subr.mxu0 0.0
    %319 = vmatpush1.msra.mxu0 0.0
    %320 = vmatprep.subr.mxu0 0.0
    %321 = vmatpush1.msra.mxu0 0.0
    %322 = vmatprep.subr.mxu0 0.0
    %323 = vmatpush1.msra.mxu0 0.0
    %324 = vmatprep.subr.mxu0 0.0
    %325 = vmatpush1.msra.mxu0 0.0
    %326 = vmatprep.subr.mxu0 0.0
    %327 = vmatpush1.msra.mxu0 0.0
    %328 = vmatprep.mubr.f32.mxu0 0.0
    %329 = vmatmul.mubr.f32.gmra.mrb[0].mxu0 %v262
    %v330 = vpop.f32.mrb[0].mxu0
    %v331 = vadd.f32 1e-05, %v330
    %v332 = vpop.f32.mrb[0].mxu0
    %333 = vdwg.mxu0
    %v334 = vrsqrt.pop %v331
    %v335 = vmul.f32 %v259, %v334
    %v336 = vlaneseq
    %v337 = vshrl.u32 %v336, 7
    %v338 = vsub.s32 2, %v337
    %v339 = vrot.slane %v28, %v338
    %v340 = vmul.f32 %v335, %v339
    %v341 = vlaneseq
    %v342 = vshrl.u32 %v341, 7
    %v343 = vsub.s32 3, %v342
    %v344 = vrot.slane %v28, %v343
    %v345 = vadd.f32 %v340, %v344
    %vm346 = vcmask 386048
    %347 = vst.msk [vmem:[#allocation2] sm:$0x3] %vm346, %v345
    // Predicated region
    $region10: #{walker_encoder_forward.1} parent=1 // pred_check
      _
    $region11: #{walker_encoder_forward.1} parent=1 // pred_check_branch
      %349 = sbr.rel (0) target = $region13
    $region12: #{walker_encoder_forward.1} parent=1 // pred_region
      %s351 = ssub.s32 32, 32
      %352 = vsyncadd [#allocation3], %s351
      %s354 = sshll.u32 [#allocation2], 4
      %s355 = int_to_ptr.vmem [resolvable:$true] %s354
      %357 = dma.vmem_to_hbm [thread:$0]  %s355, 32, %s2, [#allocation3]
    $region13: #{walker_encoder_forward.1} parent=1 // pred_fallthru
      _
    // Predicated region
    $region14: #{walker_encoder_forward.1} parent=1 // pred_check
      _
    $region15: #{walker_encoder_forward.1} parent=1 // pred_check_branch
      %359 = sbr.rel (0) target = $region17
    $region16: #{walker_encoder_forward.1} parent=1 // pred_region
      %360 = dma.done [#allocation3], 32
    $region17: #{walker_encoder_forward.1} parent=1 // pred_fallthru
      _
    %361 = vsyncpa [#allocation3], 1

</llo_original>
